<compile_context>
chip_gen: v6e
topology: v6e:2x2x1
jax: 0.10.0
libtpu: 0.0.40
codegen_flags: <defaults>
</compile_context>

<pallas_src>
import functools

import jax
import jax.numpy as jnp
from jax import lax
from jax.experimental import pallas as pl
from jax.experimental.pallas import tpu as pltpu


_CHUNK = 512   # lanes per in-kernel compute chunk (h stays in ~32 vregs)


def _round_up(n, m):
    return (n + m - 1) // m * m


def program_kernel(xt_ref, w1_ref, b1_ref, w2_ref, b2_ref, w3_ref, b3_ref,
                   out_ref):
    # Weights are tiny and block-index-constant: loaded once, VMEM-resident.
    w1 = w1_ref[...]; b1 = b1_ref[...]        # (2l, 1)
    w2 = w2_ref[...]; b2 = b2_ref[...]        # (2l, 2l), (2l, 1)
    w3 = w3_ref[...]; b3 = b3_ref[...]        # (4, 2l),  (4, 1)

    n_chunks = out_ref.shape[1] // _CHUNK

    def body(c, carry):
        off = pl.multiple_of(c * _CHUNK, _CHUNK)
        xt = xt_ref[:, pl.ds(off, _CHUNK)]    # (2, CHUNK)
        feat = xt[0:1, :]                     # row 0 = temperature feature
        mode = xt[1:2, :]                     # row 1 = mode flag

        # Layer 1 (K=1 outer product) on the VPU: broadcast mul + add.
        h = jnp.maximum(w1 * feat + b1, 0.0)                       # (2l, CHUNK)

        # Layer 2: fused block-diagonal (2l, 2l) @ (2l, CHUNK) on the MXU.
        h = jnp.dot(w2, h, preferred_element_type=jnp.float32) + b2
        h = jnp.maximum(h, 0.0)

        # Layer 3: fused block-diagonal (4, 2l) @ (2l, CHUNK).
        o = jnp.dot(w3, h, preferred_element_type=jnp.float32) + b3  # (4, CHUNK)

        # Select cool (rows 0:2) / heat (rows 2:4) pre-activation per lane
        # BEFORE the sigmoid (halves EUP work), then zero invalid-mode lanes.
        # Exact float equality matches the reference semantics
        # (res[input[:,1]==0] = cool; res[input[:,1]==1] = heat; else 0).
        z = jnp.where(mode == 0.0, o[0:2, :], o[2:4, :])
        valid = jnp.logical_or(mode == 0.0, mode == 1.0)
        out_ref[:, pl.ds(off, _CHUNK)] = jnp.where(
            valid, jax.nn.sigmoid(z), jnp.zeros_like(z))
        return carry

    lax.fori_loop(0, n_chunks, body, 0, unroll=True)


def fuse_thermostat_params(cool_params, heat_params):
    """Fuse two (1->l->l->2) MLPs into one transposed block-diagonal stack.

    Call this ONCE per parameter update, not per forward call.
    """
    w1c, b1c, w2c, b2c, w3c, b3c = cool_params
    w1h, b1h, w2h, b2h, w3h, b3h = heat_params
    l = w1c.shape[1]
    f32 = jnp.float32

    w1 = jnp.concatenate([w1c.T, w1h.T], axis=0).astype(f32)       # (2l, 1)
    b1 = jnp.concatenate([b1c.T, b1h.T], axis=0).astype(f32)       # (2l, 1)

    z_ll = jnp.zeros((l, l), f32)
    w2 = jnp.block([[w2c.T, z_ll], [z_ll, w2h.T]]).astype(f32)     # (2l, 2l)
    b2 = jnp.concatenate([b2c.T, b2h.T], axis=0).astype(f32)       # (2l, 1)

    z_2l = jnp.zeros((2, l), f32)
    w3 = jnp.block([[w3c.T, z_2l], [z_2l, w3h.T]]).astype(f32)     # (4, 2l)
    b3 = jnp.concatenate([b3c.T, b3h.T], axis=0).astype(f32)       # (4, 1)
    return w1, b1, w2, b2, w3, b3


@functools.partial(jax.jit, static_argnames=("block_b",))
def thermostat_single_nn_fused(x, fused, *, block_b=8192):
    """x: (B, 2) float32; fused = fuse_thermostat_params(...); returns (B, 2)."""
    B, D = x.shape
    assert D == 2

    # Lane block: multiple of the in-kernel chunk, capped at half the batch so
    # the "parallel" grid has >=2 steps (shards across v7x's 2 TensorCores).
    bb_target = _round_up(block_b, _CHUNK)
    half = _round_up(-(-B // 2), _CHUNK)
    bb = min(bb_target, half)
    nb = max(2, -(-B // bb))
    Bp = nb * bb
    assert bb % _CHUNK == 0

    # Single fused pad+transpose on the input (padded lanes sliced off after).
    xt = jnp.pad(x.astype(jnp.float32).T, ((0, 0), (0, Bp - B)))

    def wspec(arr):
        # Full-array block, constant index -> loaded once, resident in VMEM.
        return pl.BlockSpec(arr.shape, lambda i: (0, 0))

    out_t = pl.pallas_call(
        program_kernel,
        out_shape=jax.ShapeDtypeStruct((2, Bp), jnp.float32),
        grid=(nb,),
        in_specs=[pl.BlockSpec((2, bb), lambda i: (0, i))]
                 + [wspec(a) for a in fused],
        out_specs=pl.BlockSpec((2, bb), lambda i: (0, i)),
        compiler_params=pltpu.CompilerParams(
            dimension_semantics=("parallel",)),
    )(xt, *fused)

    return out_t[:, :B].T


def thermostat_single_nn(x, cool_params, heat_params, *, block_b=8192):
    """Convenience wrapper; prefer fusing params once and reusing them."""
    fused = fuse_thermostat_params(cool_params, heat_params)
    return thermostat_single_nn_fused(x, fused, block_b=block_b)


# ---------------- deterministic parameter init (synthetic, no checkpoint) ----

def _init_linear(key, n_in, n_out):
    kw, kb = jax.random.split(key)
    bound = 1.0 / float(n_in) ** 0.5
    w = jax.random.uniform(kw, (n_in, n_out), jnp.float32, -bound, bound)
    b = jax.random.uniform(kb, (1, n_out), jnp.float32, -bound, bound)
    return w, b


def _init_linear_relu(key, l):
    k1, k2, k3 = jax.random.split(key, 3)
    w1, b1 = _init_linear(k1, 1, l)
    w2, b2 = _init_linear(k2, l, l)
    w3, b3 = _init_linear(k3, l, 2)
    return (w1, b1, w2, b2, w3, b3)


def _mlp_ref(x, w1, b1, w2, b2, w3, b3):
    h = jnp.maximum(x @ w1 + b1, 0.0)
    h = jnp.maximum(h @ w2 + b2, 0.0)
    return jax.nn.sigmoid(h @ w3 + b3)


def _reference(x, cool_params, heat_params):
    feat = x[:, 0:1]
    mode = x[:, 1:2]
    cool = _mlp_ref(feat, *cool_params)
    heat = _mlp_ref(feat, *heat_params)
    return jnp.where(mode == 0.0, cool,
                     jnp.where(mode == 1.0, heat, jnp.zeros_like(cool)))


if __name__ == "__main__":
    key = jax.random.PRNGKey(0)
    k_in, k_cool, k_heat = jax.random.split(key, 3)

    l = 32        # hidden width of LinearReLU
    B = 16        # batch

    cool_params = _init_linear_relu(k_cool, l)
    heat_params = _init_linear_relu(k_heat, l)

    # column 0: temperature feature; column 1: mode flag alternating 0 / 1
    temp = jax.random.uniform(k_in, (B, 1), jnp.float32, 55.0, 70.0)
    mode = (jnp.arange(B) % 2).astype(jnp.float32).reshape(B, 1)
    x = jnp.concatenate([temp, mode], axis=1)

    # Fuse weights once (per parameter update), then call the jitted forward.
    fused = fuse_thermostat_params(cool_params, heat_params)
    res = thermostat_single_nn_fused(x, fused)
    res = jax.block_until_ready(res)

    ref = _reference(x, cool_params, heat_params)
    assert res.shape == (B, 2)
    assert jnp.allclose(res, ref, atol=2e-5, rtol=1e-5)

    print("KERNEL_OK")
</pallas_src>

<mosaic_0001>
module attributes {stable_mosaic.version = 11 : i64} {
  func.func @program_kernel(%arg0: i32, %arg1: memref<2x512xf32, #tpu.memory_space<vmem>>, %arg2: memref<64x1xf32, #tpu.memory_space<vmem>>, %arg3: memref<64x1xf32, #tpu.memory_space<vmem>>, %arg4: memref<64x64xf32, #tpu.memory_space<vmem>>, %arg5: memref<64x1xf32, #tpu.memory_space<vmem>>, %arg6: memref<4x64xf32, #tpu.memory_space<vmem>>, %arg7: memref<4x1xf32, #tpu.memory_space<vmem>>, %arg8: memref<2x512xf32, #tpu.memory_space<vmem>>) attributes {dimension_semantics = [#tpu.dimension_semantics<parallel>], iteration_bounds = array<i64: 2>, scalar_prefetch = 0 : i64, scratch_operands = 0 : i64, tpu.core_type = #tpu.core_type<tc>, window_params = [{transform_indices = @transform_0, window_bounds = array<i64: 2, 512>}, {pipeline_mode = #tpu.pipeline_mode<synchronous>, transform_indices = @transform_1, window_bounds = array<i64: 64, 1>}, {pipeline_mode = #tpu.pipeline_mode<synchronous>, transform_indices = @transform_2, window_bounds = array<i64: 64, 1>}, {pipeline_mode = #tpu.pipeline_mode<synchronous>, transform_indices = @transform_3, window_bounds = array<i64: 64, 64>}, {pipeline_mode = #tpu.pipeline_mode<synchronous>, transform_indices = @transform_4, window_bounds = array<i64: 64, 1>}, {pipeline_mode = #tpu.pipeline_mode<synchronous>, transform_indices = @transform_5, window_bounds = array<i64: 4, 64>}, {pipeline_mode = #tpu.pipeline_mode<synchronous>, transform_indices = @transform_6, window_bounds = array<i64: 4, 1>}, {transform_indices = @transform_7, window_bounds = array<i64: 2, 512>}]} {
    %c0 = arith.constant 0 : index
    %c0_0 = arith.constant 0 : index
    %0 = vector.load %arg2[%c0, %c0_0] : memref<64x1xf32, #tpu.memory_space<vmem>>, vector<64x1xf32>
    %c0_1 = arith.constant 0 : index
    %c0_2 = arith.constant 0 : index
    %1 = vector.load %arg3[%c0_1, %c0_2] : memref<64x1xf32, #tpu.memory_space<vmem>>, vector<64x1xf32>
    %c0_3 = arith.constant 0 : index
    %c0_4 = arith.constant 0 : index
    %2 = vector.load %arg4[%c0_3, %c0_4] : memref<64x64xf32, #tpu.memory_space<vmem>>, vector<64x64xf32>
    %c0_5 = arith.constant 0 : index
    %c0_6 = arith.constant 0 : index
    %3 = vector.load %arg5[%c0_5, %c0_6] : memref<64x1xf32, #tpu.memory_space<vmem>>, vector<64x1xf32>
    %c0_7 = arith.constant 0 : index
    %c0_8 = arith.constant 0 : index
    %4 = vector.load %arg6[%c0_7, %c0_8] : memref<4x64xf32, #tpu.memory_space<vmem>>, vector<4x64xf32>
    %c0_9 = arith.constant 0 : index
    %c0_10 = arith.constant 0 : index
    %5 = vector.load %arg7[%c0_9, %c0_10] : memref<4x1xf32, #tpu.memory_space<vmem>>, vector<4x1xf32>
    %c0_i32 = arith.constant 0 : i32
    %c512_i32 = arith.constant 512 : i32
    %6 = arith.muli %c0_i32, %c512_i32 : i32
    %7 = tpu.assume_multiple %6, 512 : i32
    %c0_11 = arith.constant 0 : index
    %8 = arith.index_cast %7 : i32 to index
    %9 = vector.load %arg1[%c0_11, %8] : memref<2x512xf32, #tpu.memory_space<vmem>>, vector<2x512xf32>
    %10 = vector.extract_strided_slice %9 {offsets = [0, 0], sizes = [1, 512], strides = [1, 1]} : vector<2x512xf32> to vector<1x512xf32>
    %11 = vector.extract_strided_slice %9 {offsets = [1, 0], sizes = [1, 512], strides = [1, 1]} : vector<2x512xf32> to vector<1x512xf32>
    %12 = vector.broadcast %0 : vector<64x1xf32> to vector<64x512xf32>
    %13 = vector.broadcast %10 : vector<1x512xf32> to vector<64x512xf32>
    %14 = arith.mulf %12, %13 : vector<64x512xf32>
    %15 = vector.broadcast %1 : vector<64x1xf32> to vector<64x512xf32>
    %16 = arith.addf %14, %15 : vector<64x512xf32>
    %cst = arith.constant 0.000000e+00 : f32
    %17 = vector.broadcast %cst : f32 to vector<64x512xf32>
    %18 = arith.maximumf %16, %17 : vector<64x512xf32>
    %cst_12 = arith.constant dense<0.000000e+00> : vector<64x512xf32>
    %19 = tpu.matmul %2, %18, %cst_12 {dimension_numbers = #tpu.dot_dimension_numbers<[1], [0], [0], [1], [0, 0, 1, 1], [], []>} : vector<64x64xf32>, vector<64x512xf32>, vector<64x512xf32> -> vector<64x512xf32>
    %20 = vector.broadcast %3 : vector<64x1xf32> to vector<64x512xf32>
    %21 = arith.addf %19, %20 : vector<64x512xf32>
    %cst_13 = arith.constant 0.000000e+00 : f32
    %22 = vector.broadcast %cst_13 : f32 to vector<64x512xf32>
    %23 = arith.maximumf %21, %22 : vector<64x512xf32>
    %cst_14 = arith.constant dense<0.000000e+00> : vector<4x512xf32>
    %24 = tpu.matmul %4, %23, %cst_14 {dimension_numbers = #tpu.dot_dimension_numbers<[1], [0], [0], [1], [0, 0, 1, 1], [], []>} : vector<4x64xf32>, vector<64x512xf32>, vector<4x512xf32> -> vector<4x512xf32>
    %25 = vector.broadcast %5 : vector<4x1xf32> to vector<4x512xf32>
    %26 = arith.addf %24, %25 : vector<4x512xf32>
    %cst_15 = arith.constant 0.000000e+00 : f32
    %27 = vector.broadcast %cst_15 : f32 to vector<1x512xf32>
    %28 = arith.cmpf oeq, %11, %27 : vector<1x512xf32>
    %29 = vector.extract_strided_slice %26 {offsets = [0, 0], sizes = [2, 512], strides = [1, 1]} : vector<4x512xf32> to vector<2x512xf32>
    %30 = vector.extract_strided_slice %26 {offsets = [2, 0], sizes = [2, 512], strides = [1, 1]} : vector<4x512xf32> to vector<2x512xf32>
    %31 = vector.shape_cast %28 : vector<1x512xi1> to vector<1x512xi1>
    %32 = vector.broadcast %31 : vector<1x512xi1> to vector<2x512xi1>
    %33 = arith.select %32, %29, %30 : vector<2x512xi1>, vector<2x512xf32>
    %cst_16 = arith.constant 0.000000e+00 : f32
    %34 = vector.broadcast %cst_16 : f32 to vector<1x512xf32>
    %35 = arith.cmpf oeq, %11, %34 : vector<1x512xf32>
    %cst_17 = arith.constant 1.000000e+00 : f32
    %36 = vector.broadcast %cst_17 : f32 to vector<1x512xf32>
    %37 = arith.cmpf oeq, %11, %36 : vector<1x512xf32>
    %38 = arith.ori %35, %37 : vector<1x512xi1>
    %39 = arith.negf %33 : vector<2x512xf32>
    %40 = math.exp %39 : vector<2x512xf32>
    %cst_18 = arith.constant 1.000000e+00 : f32
    %41 = vector.broadcast %cst_18 : f32 to vector<2x512xf32>
    %42 = arith.addf %41, %40 : vector<2x512xf32>
    %43 = arith.divf %41, %42 : vector<2x512xf32>
    %cst_19 = arith.constant 0.000000e+00 : f32
    %44 = vector.broadcast %cst_19 : f32 to vector<2x512xf32>
    %45 = vector.shape_cast %38 : vector<1x512xi1> to vector<1x512xi1>
    %46 = vector.broadcast %45 : vector<1x512xi1> to vector<2x512xi1>
    %47 = arith.select %46, %43, %44 : vector<2x512xi1>, vector<2x512xf32>
    %c0_20 = arith.constant 0 : index
    %48 = arith.index_cast %7 : i32 to index
    %49 = vector.load %arg8[%c0_20, %48] : memref<2x512xf32, #tpu.memory_space<vmem>>, vector<2x512xf32>
    tpu.vector_store %arg8[%c0_20, %48], %47 {strides = array<i32>} : memref<2x512xf32, #tpu.memory_space<vmem>>, vector<2x512xf32>,
    %c1_i32 = arith.constant 1 : i32
    return
  }
  func.func @transform_0(%arg0: i32) -> (i32, i32) {
    %c0_i32 = arith.constant 0 : i32
    %c0_i32_0 = arith.constant 0 : i32
    return %c0_i32, %arg0 : i32, i32
  }
  func.func @transform_1(%arg0: i32) -> (i32, i32) {
    %c0_i32 = arith.constant 0 : i32
    %c0_i32_0 = arith.constant 0 : i32
    %c0_i32_1 = arith.constant 0 : i32
    return %c0_i32, %c0_i32_0 : i32, i32
  }
  func.func @transform_2(%arg0: i32) -> (i32, i32) {
    %c0_i32 = arith.constant 0 : i32
    %c0_i32_0 = arith.constant 0 : i32
    %c0_i32_1 = arith.constant 0 : i32
    return %c0_i32, %c0_i32_0 : i32, i32
  }
  func.func @transform_3(%arg0: i32) -> (i32, i32) {
    %c0_i32 = arith.constant 0 : i32
    %c0_i32_0 = arith.constant 0 : i32
    %c0_i32_1 = arith.constant 0 : i32
    return %c0_i32, %c0_i32_0 : i32, i32
  }
  func.func @transform_4(%arg0: i32) -> (i32, i32) {
    %c0_i32 = arith.constant 0 : i32
    %c0_i32_0 = arith.constant 0 : i32
    %c0_i32_1 = arith.constant 0 : i32
    return %c0_i32, %c0_i32_0 : i32, i32
  }
  func.func @transform_5(%arg0: i32) -> (i32, i32) {
    %c0_i32 = arith.constant 0 : i32
    %c0_i32_0 = arith.constant 0 : i32
    %c0_i32_1 = arith.constant 0 : i32
    return %c0_i32, %c0_i32_0 : i32, i32
  }
  func.func @transform_6(%arg0: i32) -> (i32, i32) {
    %c0_i32 = arith.constant 0 : i32
    %c0_i32_0 = arith.constant 0 : i32
    %c0_i32_1 = arith.constant 0 : i32
    return %c0_i32, %c0_i32_0 : i32, i32
  }
  func.func @transform_7(%arg0: i32) -> (i32, i32) {
    %c0_i32 = arith.constant 0 : i32
    %c0_i32_0 = arith.constant 0 : i32
    return %c0_i32, %arg0 : i32, i32
  }
}

</mosaic_0001>

<llo_original>
// kernel: thermostat_single_nn_fused.1
$region0: #{thermostat_single_nn_fused.1}
  #allocation0 [shape = 'u32[]', space=smem, size = 0x4, offset = 0x4, fixed_abs, tag = 'smem constant byte address 0x4 - core index']
  #allocation1 [shape = 'u32[144,128]{1,0:T(1,128)}', space=vmem, size = 0x12000, scoped, tag = 'internal scratch']
  %s0 = inlined_call_operand.vmem [shape: f32[2,1024], index: 0, kind: input, shape index: {}]
  %s1 = inlined_call_operand.vmem [shape: f32[64,1], index: 1, kind: input, shape index: {}]
  %s2 = inlined_call_operand.vmem [shape: f32[64,1], index: 2, kind: input, shape index: {}]
  %s3 = inlined_call_operand.vmem [shape: f32[64,64], index: 3, kind: input, shape index: {}]
  %s4 = inlined_call_operand.vmem [shape: f32[64,1], index: 4, kind: input, shape index: {}]
  %s5 = inlined_call_operand.vmem [shape: f32[4,64], index: 5, kind: input, shape index: {}]
  %s6 = inlined_call_operand.vmem [shape: f32[4,1], index: 6, kind: input, shape index: {}]
  %s7 = inlined_call_operand.vmem [shape: f32[2,1024], index: 7, kind: output, shape index: {}]
  %s8 = sld [smem:[#allocation0]]
  $region61: #{thermostat_single_nn_fused.1} parent=0
    _
  %s10 = ssub.s32 1, %s8
  %s11 = scalar_select 0, %s10, %s8
  loop: start=0, step=1, limit=4
  $region2: #{thermostat_single_nn_fused.1} parent=0 // loop_pre_header
    _
  $region3: #{thermostat_single_nn_fused.1} parent=0 // loop_header
    %s13 = sphi 0, %s17
    %p14 = scmp.ge.s32.totalorder %s13, 4
    %s23 = sphi 0, %s25
    %s26 = sphi 0, %s23
    %s27 = sphi 0, %s26
    %s43 = sphi 0, %s27
    %s47 = sphi 0, %s47
    %s49 = sphi 0, %s47
    %s50 = sphi 0, %s49
    %s64 = sphi 0, %s50
    %s68 = sphi 0, %s68
    %s70 = sphi 0, %s68
    %s71 = sphi 0, %s70
    %s85 = sphi 0, %s71
    %s89 = sphi 0, %s89
    %s91 = sphi 0, %s89
    %s92 = sphi 0, %s91
    %s106 = sphi 0, %s92
    %s110 = sphi 0, %s110
    %s112 = sphi 0, %s110
    %s113 = sphi 0, %s112
    %s127 = sphi 0, %s113
    %s131 = sphi 0, %s131
    %s133 = sphi 0, %s131
    %s134 = sphi 0, %s133
    %s148 = sphi 0, %s134
    %s152 = sphi 0, %s152
    %s154 = sphi 0, %s152
    %s155 = sphi 0, %s154
    %s169 = sphi 0, %s155
    %s175 = sphi 0, %s177
    %s178 = sphi 0, %s175
    %s179 = sphi 0, %s178
    %s195 = sphi 0, %s179
  $region4: #{thermostat_single_nn_fused.1} parent=0 // loop_header_branch
    %16 = sbr.rel (%p14) target = $region8
  $region5: #{thermostat_single_nn_fused.1} parent=0 // loop_body
    %s18 = ssub.s32 %s13, 1
    %s19 = ssub.s32 %s13, 2
    %s20 = sadd.s32 %s13, 1
    %s21 = ssub.s32 %s13, %s20
    %p22 = scmp.eq.s32.totalorder %s21, 0
    %s24 = sadd.s32 %s23, 1
    %s25 = scalar_select %p22, %s23, %s24
    %p28 = pneg %p22
    %p29 = scmp.eq.s32.totalorder %s13, 1
    %p30 = por %p28, %p29
    %p31 = scmp.ne.s32.totalorder %s23, %s26
    %p32 = scmp.eq.s32.totalorder %s13, 0
    %p33 = por %p31, %p32
    %p34 = scmp.ne.s32.totalorder %s23, %s26
    %p35 = scmp.eq.s32.totalorder %s18, 1
    %p36 = por %p34, %p35
    %p37 = scmp.ne.s32.totalorder %s26, %s27
    %p38 = scmp.eq.s32.totalorder %s18, 0
    %p39 = por %p37, %p38
    %p40 = scmp.ne.s32.totalorder %s26, %s27
    %p41 = scmp.eq.s32.totalorder %s19, 1
    %p42 = por %p40, %p41
    %p44 = scmp.ne.s32.totalorder %s27, %s43
    %p45 = scmp.eq.s32.totalorder %s19, 0
    %p46 = por %p44, %p45
    %s48 = sadd.s32 %s47, 1
    %p51 = scmp.eq.s32.totalorder %s13, 1
    %p52 = scmp.ne.s32.totalorder %s47, %s49
    %p53 = scmp.eq.s32.totalorder %s13, 0
    %p54 = por %p52, %p53
    %p55 = scmp.ne.s32.totalorder %s47, %s49
    %p56 = scmp.eq.s32.totalorder %s18, 1
    %p57 = por %p55, %p56
    %p58 = scmp.ne.s32.totalorder %s49, %s50
    %p59 = scmp.eq.s32.totalorder %s18, 0
    %p60 = por %p58, %p59
    %p61 = scmp.ne.s32.totalorder %s49, %s50
    %p62 = scmp.eq.s32.totalorder %s19, 1
    %p63 = por %p61, %p62
    %p65 = scmp.ne.s32.totalorder %s50, %s64
    %p66 = scmp.eq.s32.totalorder %s19, 0
    %p67 = por %p65, %p66
    %s69 = sadd.s32 %s68, 1
    %p72 = scmp.eq.s32.totalorder %s13, 1
    %p73 = scmp.ne.s32.totalorder %s68, %s70
    %p74 = scmp.eq.s32.totalorder %s13, 0
    %p75 = por %p73, %p74
    %p76 = scmp.ne.s32.totalorder %s68, %s70
    %p77 = scmp.eq.s32.totalorder %s18, 1
    %p78 = por %p76, %p77
    %p79 = scmp.ne.s32.totalorder %s70, %s71
    %p80 = scmp.eq.s32.totalorder %s18, 0
    %p81 = por %p79, %p80
    %p82 = scmp.ne.s32.totalorder %s70, %s71
    %p83 = scmp.eq.s32.totalorder %s19, 1
    %p84 = por %p82, %p83
    %p86 = scmp.ne.s32.totalorder %s71, %s85
    %p87 = scmp.eq.s32.totalorder %s19, 0
    %p88 = por %p86, %p87
    %s90 = sadd.s32 %s89, 1
    %p93 = scmp.eq.s32.totalorder %s13, 1
    %p94 = scmp.ne.s32.totalorder %s89, %s91
    %p95 = scmp.eq.s32.totalorder %s13, 0
    %p96 = por %p94, %p95
    %p97 = scmp.ne.s32.totalorder %s89, %s91
    %p98 = scmp.eq.s32.totalorder %s18, 1
    %p99 = por %p97, %p98
    %p100 = scmp.ne.s32.totalorder %s91, %s92
    %p101 = scmp.eq.s32.totalorder %s18, 0
    %p102 = por %p100, %p101
    %p103 = scmp.ne.s32.totalorder %s91, %s92
    %p104 = scmp.eq.s32.totalorder %s19, 1
    %p105 = por %p103, %p104
    %p107 = scmp.ne.s32.totalorder %s92, %s106
    %p108 = scmp.eq.s32.totalorder %s19, 0
    %p109 = por %p107, %p108
    %s111 = sadd.s32 %s110, 1
    %p114 = scmp.eq.s32.totalorder %s13, 1
    %p115 = scmp.ne.s32.totalorder %s110, %s112
    %p116 = scmp.eq.s32.totalorder %s13, 0
    %p117 = por %p115, %p116
    %p118 = scmp.ne.s32.totalorder %s110, %s112
    %p119 = scmp.eq.s32.totalorder %s18, 1
    %p120 = por %p118, %p119
    %p121 = scmp.ne.s32.totalorder %s112, %s113
    %p122 = scmp.eq.s32.totalorder %s18, 0
    %p123 = por %p121, %p122
    %p124 = scmp.ne.s32.totalorder %s112, %s113
    %p125 = scmp.eq.s32.totalorder %s19, 1
    %p126 = por %p124, %p125
    %p128 = scmp.ne.s32.totalorder %s113, %s127
    %p129 = scmp.eq.s32.totalorder %s19, 0
    %p130 = por %p128, %p129
    %s132 = sadd.s32 %s131, 1
    %p135 = scmp.eq.s32.totalorder %s13, 1
    %p136 = scmp.ne.s32.totalorder %s131, %s133
    %p137 = scmp.eq.s32.totalorder %s13, 0
    %p138 = por %p136, %p137
    %p139 = scmp.ne.s32.totalorder %s131, %s133
    %p140 = scmp.eq.s32.totalorder %s18, 1
    %p141 = por %p139, %p140
    %p142 = scmp.ne.s32.totalorder %s133, %s134
    %p143 = scmp.eq.s32.totalorder %s18, 0
    %p144 = por %p142, %p143
    %p145 = scmp.ne.s32.totalorder %s133, %s134
    %p146 = scmp.eq.s32.totalorder %s19, 1
    %p147 = por %p145, %p146
    %p149 = scmp.ne.s32.totalorder %s134, %s148
    %p150 = scmp.eq.s32.totalorder %s19, 0
    %p151 = por %p149, %p150
    %s153 = sadd.s32 %s152, 1
    %p156 = scmp.eq.s32.totalorder %s13, 1
    %p157 = scmp.ne.s32.totalorder %s152, %s154
    %p158 = scmp.eq.s32.totalorder %s13, 0
    %p159 = por %p157, %p158
    %p160 = scmp.ne.s32.totalorder %s152, %s154
    %p161 = scmp.eq.s32.totalorder %s18, 1
    %p162 = por %p160, %p161
    %p163 = scmp.ne.s32.totalorder %s154, %s155
    %p164 = scmp.eq.s32.totalorder %s18, 0
    %p165 = por %p163, %p164
    %p166 = scmp.ne.s32.totalorder %s154, %s155
    %p167 = scmp.eq.s32.totalorder %s19, 1
    %p168 = por %p166, %p167
    %p170 = scmp.ne.s32.totalorder %s155, %s169
    %p171 = scmp.eq.s32.totalorder %s19, 0
    %p172 = por %p170, %p171
    %s173 = ssub.s32 %s13, %s20
    %p174 = scmp.eq.s32.totalorder %s173, 0
    %s176 = sadd.s32 %s175, 1
    %s177 = scalar_select %p174, %s175, %s176
    %p180 = pneg %p174
    %p181 = scmp.eq.s32.totalorder %s13, 1
    %p182 = por %p180, %p181
    %p183 = scmp.ne.s32.totalorder %s175, %s178
    %p184 = scmp.eq.s32.totalorder %s13, 0
    %p185 = por %p183, %p184
    %p186 = scmp.ne.s32.totalorder %s175, %s178
    %p187 = scmp.eq.s32.totalorder %s18, 1
    %p188 = por %p186, %p187
    %p189 = scmp.ne.s32.totalorder %s178, %s179
    %p190 = scmp.eq.s32.totalorder %s18, 0
    %p191 = por %p189, %p190
    %p192 = scmp.ne.s32.totalorder %s178, %s179
    %p193 = scmp.eq.s32.totalorder %s19, 1
    %p194 = por %p192, %p193
    %p196 = scmp.ne.s32.totalorder %s179, %s195
    %p197 = scmp.eq.s32.totalorder %s19, 0
    %p198 = por %p196, %p197
    %p199 = scmp.le.s32.totalorder 1, %s13
    %p200 = scmp.lt.s32.totalorder %s13, 3
    %p201 = pnand %p199, %p200
    %p202 = pneg %p201
    // Predicated region
    $region9: #{thermostat_single_nn_fused.1} parent=5 // pred_check
      _
    $region10: #{thermostat_single_nn_fused.1} parent=5 // pred_check_branch
      %204 = sbr.rel (%p201) target = $region12
    $region11: #{thermostat_single_nn_fused.1} parent=5 // pred_region
      %s205 = ssub.s32 %s13, 1
      // Predicated region
      $region13: #{thermostat_single_nn_fused.1} parent=11 // pred_check
        %p206 = pneg %p60
      $region14: #{thermostat_single_nn_fused.1} parent=11 // pred_check_branch
        %208 = sbr.rel (%p206) target = $region16
      $region15: #{thermostat_single_nn_fused.1} parent=11 // pred_region
        _
      $region16: #{thermostat_single_nn_fused.1} parent=11 // pred_fallthru
        _
      // Predicated region
      $region17: #{thermostat_single_nn_fused.1} parent=11 // pred_check
        %p209 = pneg %p81
      $region18: #{thermostat_single_nn_fused.1} parent=11 // pred_check_branch
        %211 = sbr.rel (%p209) target = $region20
      $region19: #{thermostat_single_nn_fused.1} parent=11 // pred_region
        _
      $region20: #{thermostat_single_nn_fused.1} parent=11 // pred_fallthru
        _
      // Predicated region
      $region21: #{thermostat_single_nn_fused.1} parent=11 // pred_check
        %p212 = pneg %p102
      $region22: #{thermostat_single_nn_fused.1} parent=11 // pred_check_branch
        %214 = sbr.rel (%p212) target = $region24
      $region23: #{thermostat_single_nn_fused.1} parent=11 // pred_region
        _
      $region24: #{thermostat_single_nn_fused.1} parent=11 // pred_fallthru
        _
      // Predicated region
      $region25: #{thermostat_single_nn_fused.1} parent=11 // pred_check
        %p215 = pneg %p123
      $region26: #{thermostat_single_nn_fused.1} parent=11 // pred_check_branch
        %217 = sbr.rel (%p215) target = $region28
      $region27: #{thermostat_single_nn_fused.1} parent=11 // pred_region
        _
      $region28: #{thermostat_single_nn_fused.1} parent=11 // pred_fallthru
        _
      // Predicated region
      $region29: #{thermostat_single_nn_fused.1} parent=11 // pred_check
        %p218 = pneg %p144
      $region30: #{thermostat_single_nn_fused.1} parent=11 // pred_check_branch
        %220 = sbr.rel (%p218) target = $region32
      $region31: #{thermostat_single_nn_fused.1} parent=11 // pred_region
        _
      $region32: #{thermostat_single_nn_fused.1} parent=11 // pred_fallthru
        _
      // Predicated region
      $region33: #{thermostat_single_nn_fused.1} parent=11 // pred_check
        %p221 = pneg %p165
      $region34: #{thermostat_single_nn_fused.1} parent=11 // pred_check_branch
        %223 = sbr.rel (%p221) target = $region36
      $region35: #{thermostat_single_nn_fused.1} parent=11 // pred_region
        _
      $region36: #{thermostat_single_nn_fused.1} parent=11 // pred_fallthru
        _
    $region12: #{thermostat_single_nn_fused.1} parent=5 // pred_fallthru
      _
    %p224 = scmp.lt.s32.totalorder %s13, 2
    // Predicated region
    $region37: #{thermostat_single_nn_fused.1} parent=5 // pred_check
      %p225 = pneg %p224
    $region38: #{thermostat_single_nn_fused.1} parent=5 // pred_check_branch
      %227 = sbr.rel (%p225) target = $region40
    $region39: #{thermostat_single_nn_fused.1} parent=5 // pred_region
      // Predicated region
      $region41: #{thermostat_single_nn_fused.1} parent=39 // pred_check
        %p228 = pneg %p33
      $region42: #{thermostat_single_nn_fused.1} parent=39 // pred_check_branch
        %230 = sbr.rel (%p228) target = $region44
      $region43: #{thermostat_single_nn_fused.1} parent=39 // pred_region
        %s231 = smul.u32 4, %s13
        %p232 = scmp.lt.s32.totalorder %s231, 7
        %s233 = scalar_select %p232, %s231, 7
        %s234 = smul.addr %s233, 2
        %s235 = scalar_lea.vmem %s0, %s234
        %s236 = smul.u32 4, %s13
      $region44: #{thermostat_single_nn_fused.1} parent=39 // pred_fallthru
        _
    $region40: #{thermostat_single_nn_fused.1} parent=5 // pred_fallthru
      _
    %p237 = scmp.le.s32.totalorder 1, %s13
    %p238 = scmp.lt.s32.totalorder %s13, 3
    %p239 = pnand %p237, %p238
    %p240 = pneg %p239
    // Predicated region
    $region45: #{thermostat_single_nn_fused.1} parent=5 // pred_check
      _
    $region46: #{thermostat_single_nn_fused.1} parent=5 // pred_check_branch
      %242 = sbr.rel (%p239) target = $region48
    $region47: #{thermostat_single_nn_fused.1} parent=5 // pred_region
      %s243 = ssub.s32 %s13, 1
      %s244 = smul.u32 4, %s18
      %p245 = scmp.lt.s32.totalorder %s244, 7
      %s246 = scalar_select %p245, %s244, 7
      %s247 = smul.addr %s246, 2
      %s248 = scalar_lea.vmem %s0, %s247
      %p249 = pneg %p39
      %p250 = pneg %p36
      %p251 = pneg %p60
      %p252 = pneg %p57
      %p253 = pneg %p81
      %p254 = pneg %p78
      %p255 = pneg %p102
      %p256 = pneg %p99
      %p257 = pneg %p123
      %p258 = pneg %p120
      %p259 = pneg %p144
      %p260 = pneg %p141
      %p261 = pneg %p165
      %p262 = pneg %p162
      %p263 = pneg %p191
      %p264 = pneg %p188
      %s265 = smul.u32 4, %s18
      %p266 = scmp.lt.s32.totalorder %s265, 7
      %s267 = scalar_select %p266, %s265, 7
      %s268 = smul.addr %s267, 2
      %s269 = scalar_lea.vmem %s7, %s268
      %s270 = smul.u32 4, %s18
      %p271 = scmp.lt.s32.totalorder %s270, 7
      %s272 = scalar_select %p271, %s270, 7
      %s273 = smul.addr %s272, 2
      %s274 = scalar_lea.vmem %s0, %s273
      %s275 = smul.u32 4, %s18
      %s276 = smul.u32 4, %s18
      %p277 = scmp.lt.s32.totalorder %s276, 7
      %s278 = scalar_select %p277, %s276, 7
      %s279 = smul.addr %s278, 2
      %s280 = scalar_lea.vmem %s7, %s279
      %s281 = smul.u32 4, %s18
      %v282 = vld [vmem:[%s1] sm:$0xff]
      %v283 = vld [vmem:[%s1 + $0x8] sm:$0xff]
      %v284 = vld [vmem:[%s1 + $0x10] sm:$0xff]
      %v285 = vld [vmem:[%s1 + $0x18] sm:$0xff]
      %v286 = vld [vmem:[%s1 + $0x20] sm:$0xff]
      %v287 = vld [vmem:[%s1 + $0x28] sm:$0xff]
      %v288 = vld [vmem:[%s1 + $0x30] sm:$0xff]
      %v289 = vld [vmem:[%s1 + $0x38] sm:$0xff]
      %v290 = vld [vmem:[%s2] sm:$0xff]
      %v291 = vld [vmem:[%s2 + $0x8] sm:$0xff]
      %v292 = vld [vmem:[%s2 + $0x10] sm:$0xff]
      %v293 = vld [vmem:[%s2 + $0x18] sm:$0xff]
      %v294 = vld [vmem:[%s2 + $0x20] sm:$0xff]
      %v295 = vld [vmem:[%s2 + $0x28] sm:$0xff]
      %v296 = vld [vmem:[%s2 + $0x30] sm:$0xff]
      %v297 = vld [vmem:[%s2 + $0x38] sm:$0xff]
      %v298 = vld [vmem:[%s3] sm:$0xff]
      %v299 = vld [vmem:[%s3 + $0x8] sm:$0xff]
      %v300 = vld [vmem:[%s3 + $0x10] sm:$0xff]
      %v301 = vld [vmem:[%s3 + $0x18] sm:$0xff]
      %v302 = vld [vmem:[%s3 + $0x20] sm:$0xff]
      %v303 = vld [vmem:[%s3 + $0x28] sm:$0xff]
      %v304 = vld [vmem:[%s3 + $0x30] sm:$0xff]
      %v305 = vld [vmem:[%s3 + $0x38] sm:$0xff]
      %v306 = vld [vmem:[%s4] sm:$0xff]
      %v307 = vld [vmem:[%s4 + $0x8] sm:$0xff]
      %v308 = vld [vmem:[%s4 + $0x10] sm:$0xff]
      %v309 = vld [vmem:[%s4 + $0x18] sm:$0xff]
      %v310 = vld [vmem:[%s4 + $0x20] sm:$0xff]
      %v311 = vld [vmem:[%s4 + $0x28] sm:$0xff]
      %v312 = vld [vmem:[%s4 + $0x30] sm:$0xff]
      %v313 = vld [vmem:[%s4 + $0x38] sm:$0xff]
      %v314 = vld [vmem:[%s5] sm:$0xf]
      %v315 = vld [vmem:[%s6] sm:$0xf]
      %v316 = vld [vmem:[%s274] sm:$0xff]
      %318 = vset.pattern.permute.xlu0 0
      %319 = vperm.xlu0 %318, %v282
      %v320 = vpop.permute.xlu0 %319
      %323 = vset.pattern.permute.xlu0 0
      %324 = vperm.xlu0 %323, %v283
      %v325 = vpop.permute.xlu0 %324
      %328 = vset.pattern.permute.xlu0 0
      %329 = vperm.xlu0 %328, %v284
      %v330 = vpop.permute.xlu0 %329
      %333 = vset.pattern.permute.xlu0 0
      %334 = vperm.xlu0 %333, %v285
      %v335 = vpop.permute.xlu0 %334
      %338 = vset.pattern.permute.xlu0 0
      %339 = vperm.xlu0 %338, %v286
      %v340 = vpop.permute.xlu0 %339
      %343 = vset.pattern.permute.xlu0 0
      %344 = vperm.xlu0 %343, %v287
      %v345 = vpop.permute.xlu0 %344
      %348 = vset.pattern.permute.xlu0 0
      %349 = vperm.xlu0 %348, %v288
      %v350 = vpop.permute.xlu0 %349
      %353 = vset.pattern.permute.xlu0 0
      %354 = vperm.xlu0 %353, %v289
      %v355 = vpop.permute.xlu0 %354
      %v358 = vlaneseq
      %v359 = vshrl.u32 %v358, 7
      %v360 = vsub.s32 0, %v359
      %v361 = vrot.slane %v316, %v360
      %v362 = vlaneseq
      %v363 = vshrl.u32 %v362, 7
      %v364 = vsub.s32 2, %v363
      %v365 = vrot.slane %v316, %v364
      %v366 = vlaneseq
      %v367 = vshrl.u32 %v366, 7
      %v368 = vsub.s32 4, %v367
      %v369 = vrot.slane %v316, %v368
      %v370 = vlaneseq
      %v371 = vshrl.u32 %v370, 7
      %v372 = vsub.s32 6, %v371
      %v373 = vrot.slane %v316, %v372
      %v378 = vlaneseq
      %v379 = vshrl.u32 %v378, 7
      %v380 = vsub.s32 0, %v379
      %v381 = vrot.slane %v361, %v380
      %v382 = vlaneseq
      %v383 = vshrl.u32 %v382, 7
      %v384 = vsub.s32 0, %v383
      %v385 = vrot.slane %v365, %v384
      %v386 = vlaneseq
      %v387 = vshrl.u32 %v386, 7
      %v388 = vsub.s32 0, %v387
      %v389 = vrot.slane %v369, %v388
      %v390 = vlaneseq
      %v391 = vshrl.u32 %v390, 7
      %v392 = vsub.s32 0, %v391
      %v393 = vrot.slane %v373, %v392
      %v394 = vmul.f32 %v320, %v381
      %v395 = vmul.f32 %v320, %v385
      %v396 = vmul.f32 %v320, %v389
      %v397 = vmul.f32 %v320, %v393
      %v398 = vmul.f32 %v325, %v381
      %v399 = vmul.f32 %v325, %v385
      %v400 = vmul.f32 %v325, %v389
      %v401 = vmul.f32 %v325, %v393
      %v402 = vmul.f32 %v330, %v381
      %v403 = vmul.f32 %v330, %v385
      %v404 = vmul.f32 %v330, %v389
      %v405 = vmul.f32 %v330, %v393
      %v406 = vmul.f32 %v335, %v381
      %v407 = vmul.f32 %v335, %v385
      %v408 = vmul.f32 %v335, %v389
      %v409 = vmul.f32 %v335, %v393
      %v410 = vmul.f32 %v340, %v381
      %v411 = vmul.f32 %v340, %v385
      %v412 = vmul.f32 %v340, %v389
      %v413 = vmul.f32 %v340, %v393
      %v414 = vmul.f32 %v345, %v381
      %v415 = vmul.f32 %v345, %v385
      %v416 = vmul.f32 %v345, %v389
      %v417 = vmul.f32 %v345, %v393
      %v418 = vmul.f32 %v350, %v381
      %v419 = vmul.f32 %v350, %v385
      %v420 = vmul.f32 %v350, %v389
      %v421 = vmul.f32 %v350, %v393
      %v422 = vmul.f32 %v355, %v381
      %v423 = vmul.f32 %v355, %v385
      %v424 = vmul.f32 %v355, %v389
      %v425 = vmul.f32 %v355, %v393
      %427 = vset.pattern.permute.xlu0 0
      %428 = vperm.xlu0 %427, %v290
      %v429 = vpop.permute.xlu0 %428
      %432 = vset.pattern.permute.xlu0 0
      %433 = vperm.xlu0 %432, %v291
      %v434 = vpop.permute.xlu0 %433
      %437 = vset.pattern.permute.xlu0 0
      %438 = vperm.xlu0 %437, %v292
      %v439 = vpop.permute.xlu0 %438
      %442 = vset.pattern.permute.xlu0 0
      %443 = vperm.xlu0 %442, %v293
      %v444 = vpop.permute.xlu0 %443
      %447 = vset.pattern.permute.xlu0 0
      %448 = vperm.xlu0 %447, %v294
      %v449 = vpop.permute.xlu0 %448
      %452 = vset.pattern.permute.xlu0 0
      %453 = vperm.xlu0 %452, %v295
      %v454 = vpop.permute.xlu0 %453
      %457 = vset.pattern.permute.xlu0 0
      %458 = vperm.xlu0 %457, %v296
      %v459 = vpop.permute.xlu0 %458
      %462 = vset.pattern.permute.xlu0 0
      %463 = vperm.xlu0 %462, %v297
      %v464 = vpop.permute.xlu0 %463
      %v466 = vadd.f32 %v394, %v429
      %v467 = vadd.f32 %v395, %v429
      %v468 = vadd.f32 %v396, %v429
      %v469 = vadd.f32 %v397, %v429
      %v470 = vadd.f32 %v398, %v434
      %v471 = vadd.f32 %v399, %v434
      %v472 = vadd.f32 %v400, %v434
      %v473 = vadd.f32 %v401, %v434
      %v474 = vadd.f32 %v402, %v439
      %v475 = vadd.f32 %v403, %v439
      %v476 = vadd.f32 %v404, %v439
      %v477 = vadd.f32 %v405, %v439
      %v478 = vadd.f32 %v406, %v444
      %v479 = vadd.f32 %v407, %v444
      %v480 = vadd.f32 %v408, %v444
      %v481 = vadd.f32 %v409, %v444
      %v482 = vadd.f32 %v410, %v449
      %v483 = vadd.f32 %v411, %v449
      %v484 = vadd.f32 %v412, %v449
      %v485 = vadd.f32 %v413, %v449
      %v486 = vadd.f32 %v414, %v454
      %v487 = vadd.f32 %v415, %v454
      %v488 = vadd.f32 %v416, %v454
      %v489 = vadd.f32 %v417, %v454
      %v490 = vadd.f32 %v418, %v459
      %v491 = vadd.f32 %v419, %v459
      %v492 = vadd.f32 %v420, %v459
      %v493 = vadd.f32 %v421, %v459
      %v494 = vadd.f32 %v422, %v464
      %v495 = vadd.f32 %v423, %v464
      %v496 = vadd.f32 %v424, %v464
      %v497 = vadd.f32 %v425, %v464
      %v498 = vmax.f32 %v466, 0.0
      %v499 = vmax.f32 %v467, 0.0
      %v500 = vmax.f32 %v468, 0.0
      %v501 = vmax.f32 %v469, 0.0
      %v502 = vmax.f32 %v470, 0.0
      %v503 = vmax.f32 %v471, 0.0
      %v504 = vmax.f32 %v472, 0.0
      %v505 = vmax.f32 %v473, 0.0
      %v506 = vmax.f32 %v474, 0.0
      %v507 = vmax.f32 %v475, 0.0
      %v508 = vmax.f32 %v476, 0.0
      %v509 = vmax.f32 %v477, 0.0
      %v510 = vmax.f32 %v478, 0.0
      %v511 = vmax.f32 %v479, 0.0
      %v512 = vmax.f32 %v480, 0.0
      %v513 = vmax.f32 %v481, 0.0
      %v514 = vmax.f32 %v482, 0.0
      %v515 = vmax.f32 %v483, 0.0
      %v516 = vmax.f32 %v484, 0.0
      %v517 = vmax.f32 %v485, 0.0
      %v518 = vmax.f32 %v486, 0.0
      %v519 = vmax.f32 %v487, 0.0
      %v520 = vmax.f32 %v488, 0.0
      %v521 = vmax.f32 %v489, 0.0
      %v522 = vmax.f32 %v490, 0.0
      %v523 = vmax.f32 %v491, 0.0
      %v524 = vmax.f32 %v492, 0.0
      %v525 = vmax.f32 %v493, 0.0
      %v526 = vmax.f32 %v494, 0.0
      %v527 = vmax.f32 %v495, 0.0
      %v528 = vmax.f32 %v496, 0.0
      %v529 = vmax.f32 %v497, 0.0
      %531 = vset.pattern.permute.xlu0 0
      %532 = vperm.xlu0 %531, %v306
      %v533 = vpop.permute.xlu0 %532
      %536 = vset.pattern.permute.xlu0 0
      %537 = vperm.xlu0 %536, %v307
      %v538 = vpop.permute.xlu0 %537
      %541 = vset.pattern.permute.xlu0 0
      %542 = vperm.xlu0 %541, %v308
      %v543 = vpop.permute.xlu0 %542
      %546 = vset.pattern.permute.xlu0 0
      %547 = vperm.xlu0 %546, %v309
      %v548 = vpop.permute.xlu0 %547
      %551 = vset.pattern.permute.xlu0 0
      %552 = vperm.xlu0 %551, %v310
      %v553 = vpop.permute.xlu0 %552
      %556 = vset.pattern.permute.xlu0 0
      %557 = vperm.xlu0 %556, %v311
      %v558 = vpop.permute.xlu0 %557
      %561 = vset.pattern.permute.xlu0 0
      %562 = vperm.xlu0 %561, %v312
      %v563 = vpop.permute.xlu0 %562
      %566 = vset.pattern.permute.xlu0 0
      %567 = vperm.xlu0 %566, %v313
      %v568 = vpop.permute.xlu0 %567
      %vm570 = vcmask 523264
      %v572 = vsel %vm570, %v298, 0
      %v575 = vsel %vm570, %v299, 0
      %v578 = vsel %vm570, %v300, 0
      %v581 = vsel %vm570, %v301, 0
      %v584 = vsel %vm570, %v302, 0
      %v587 = vsel %vm570, %v303, 0
      %v590 = vsel %vm570, %v304, 0
      %v593 = vsel %vm570, %v305, 0
      %595 = vmatprep.subr.mxu0 0.0
      %596 = vmatpush1.msra.mxu0 0.0
      %597 = vmatprep.subr.mxu0 0.0
      %598 = vmatpush1.msra.mxu0 0.0
      %599 = vmatprep.subr.mxu0 0.0
      %600 = vmatpush1.msra.mxu0 0.0
      %601 = vmatprep.subr.mxu0 0.0
      %602 = vmatpush1.msra.mxu0 0.0
      %603 = vmatprep.subr.mxu0 0.0
      %604 = vmatpush1.msra.mxu0 0.0
      %605 = vmatprep.subr.mxu0 0.0
      %606 = vmatpush1.msra.mxu0 0.0
      %607 = vmatprep.subr.mxu0 0.0
      %608 = vmatpush1.msra.mxu0 0.0
      %609 = vmatprep.subr.mxu0 0.0
      %610 = vmatpush1.msra.mxu0 0.0
      %611 = vmatprep.subr.mxu0 %v527
      %612 = vmatpush1.msra.mxu0 %v526
      %613 = vmatprep.subr.mxu0 %v523
      %614 = vmatpush1.msra.mxu0 %v522
      %615 = vmatprep.subr.mxu0 %v519
      %616 = vmatpush1.msra.mxu0 %v518
      %617 = vmatprep.subr.mxu0 %v515
      %618 = vmatpush1.msra.mxu0 %v514
      %619 = vmatprep.subr.mxu0 %v511
      %620 = vmatpush1.msra.mxu0 %v510
      %621 = vmatprep.subr.mxu0 %v507
      %622 = vmatpush1.msra.mxu0 %v506
      %623 = vmatprep.subr.mxu0 %v503
      %624 = vmatpush1.msra.mxu0 %v502
      %625 = vmatprep.subr.mxu0 %v499
      %626 = vmatpush1.msra.mxu0 %v498
      %627 = vmatprep.subr.mxu0 0.0
      %628 = vmatpush2.msra.mxu0 0.0
      %629 = vmatprep.subr.mxu0 0.0
      %630 = vmatpush2.msra.mxu0 0.0
      %631 = vmatprep.subr.mxu0 0.0
      %632 = vmatpush2.msra.mxu0 0.0
      %633 = vmatprep.subr.mxu0 0.0
      %634 = vmatpush2.msra.mxu0 0.0
      %635 = vmatprep.subr.mxu0 0.0
      %636 = vmatpush2.msra.mxu0 0.0
      %637 = vmatprep.subr.mxu0 0.0
      %638 = vmatpush2.msra.mxu0 0.0
      %639 = vmatprep.subr.mxu0 0.0
      %640 = vmatpush2.msra.mxu0 0.0
      %641 = vmatprep.subr.mxu0 0.0
      %642 = vmatpush2.msra.mxu0 0.0
      %643 = vmatprep.subr.mxu0 0.0
      %644 = vmatpush2.msra.mxu0 0.0
      %645 = vmatprep.subr.mxu0 0.0
      %646 = vmatpush2.msra.mxu0 0.0
      %647 = vmatprep.subr.mxu0 0.0
      %648 = vmatpush2.msra.mxu0 0.0
      %649 = vmatprep.subr.mxu0 0.0
      %650 = vmatpush2.msra.mxu0 0.0
      %651 = vmatprep.subr.mxu0 0.0
      %652 = vmatpush2.msra.mxu0 0.0
      %653 = vmatprep.subr.mxu0 0.0
      %654 = vmatpush2.msra.mxu0 0.0
      %655 = vmatprep.subr.mxu0 0.0
      %656 = vmatpush2.msra.mxu0 0.0
      %657 = vmatprep.subr.mxu0 0.0
      %658 = vmatpush2.msra.mxu0 0.0
      %659 = vmatprep.mubr.f32.mxu0 0.0
      %660 = vmatmul.mubr.f32.gmra.mxu0 %v572
      %v661 = vpop.f32.mrf.mxu0
      %v662 = vadd.f32 %v533, %v661
      %v663 = vpop.f32.mrf.mxu0
      %v664 = vadd.f32 %v533, %v663
      %665 = vmatprep.mubr.f32.mxu0 0.0
      %666 = vmatmul.mubr.f32.gmra.mxu0 %v575
      %v667 = vpop.f32.mrf.mxu0
      %v668 = vadd.f32 %v538, %v667
      %v669 = vpop.f32.mrf.mxu0
      %v670 = vadd.f32 %v538, %v669
      %671 = vmatprep.mubr.f32.mxu0 0.0
      %672 = vmatmul.mubr.f32.gmra.mxu0 %v578
      %v673 = vpop.f32.mrf.mxu0
      %v674 = vadd.f32 %v543, %v673
      %v675 = vpop.f32.mrf.mxu0
      %v676 = vadd.f32 %v543, %v675
      %677 = vmatprep.mubr.f32.mxu0 0.0
      %678 = vmatmul.mubr.f32.gmra.mxu0 %v581
      %v679 = vpop.f32.mrf.mxu0
      %v680 = vadd.f32 %v548, %v679
      %v681 = vpop.f32.mrf.mxu0
      %v682 = vadd.f32 %v548, %v681
      %683 = vmatprep.mubr.f32.mxu0 0.0
      %684 = vmatmul.mubr.f32.gmra.mxu0 %v584
      %v685 = vpop.f32.mrf.mxu0
      %v686 = vadd.f32 %v553, %v685
      %v687 = vpop.f32.mrf.mxu0
      %v688 = vadd.f32 %v553, %v687
      %689 = vmatprep.mubr.f32.mxu0 0.0
      %690 = vmatmul.mubr.f32.gmra.mxu0 %v587
      %v691 = vpop.f32.mrf.mxu0
      %v692 = vadd.f32 %v558, %v691
      %v693 = vpop.f32.mrf.mxu0
      %v694 = vadd.f32 %v558, %v693
      %695 = vmatprep.mubr.f32.mxu0 0.0
      %696 = vmatmul.mubr.f32.gmra.mxu0 %v590
      %v697 = vpop.f32.mrf.mxu0
      %v698 = vadd.f32 %v563, %v697
      %v699 = vpop.f32.mrf.mxu0
      %v700 = vadd.f32 %v563, %v699
      %701 = vmatprep.mubr.f32.mxu0 0.0
      %702 = vmatmul.mubr.f32.gmra.mxu0 %v593
      %v703 = vpop.f32.mrf.mxu0
      %v704 = vadd.f32 %v568, %v703
      %v705 = vpop.f32.mrf.mxu0
      %v706 = vadd.f32 %v568, %v705
      %707 = vdwg.mxu0
      %708 = vmatprep.subr.mxu0 0.0
      %709 = vmatpush1.msra.mxu0 0.0
      %710 = vmatprep.subr.mxu0 0.0
      %711 = vmatpush1.msra.mxu0 0.0
      %712 = vmatprep.subr.mxu0 0.0
      %713 = vmatpush1.msra.mxu0 0.0
      %714 = vmatprep.subr.mxu0 0.0
      %715 = vmatpush1.msra.mxu0 0.0
      %716 = vmatprep.subr.mxu0 0.0
      %717 = vmatpush1.msra.mxu0 0.0
      %718 = vmatprep.subr.mxu0 0.0
      %719 = vmatpush1.msra.mxu0 0.0
      %720 = vmatprep.subr.mxu0 0.0
      %721 = vmatpush1.msra.mxu0 0.0
      %722 = vmatprep.subr.mxu0 0.0
      %723 = vmatpush1.msra.mxu0 0.0
      %724 = vmatprep.subr.mxu0 %v529
      %725 = vmatpush1.msra.mxu0 %v528
      %726 = vmatprep.subr.mxu0 %v525
      %727 = vmatpush1.msra.mxu0 %v524
      %728 = vmatprep.subr.mxu0 %v521
      %729 = vmatpush1.msra.mxu0 %v520
      %730 = vmatprep.subr.mxu0 %v517
      %731 = vmatpush1.msra.mxu0 %v516
      %732 = vmatprep.subr.mxu0 %v513
      %733 = vmatpush1.msra.mxu0 %v512
      %734 = vmatprep.subr.mxu0 %v509
      %735 = vmatpush1.msra.mxu0 %v508
      %736 = vmatprep.subr.mxu0 %v505
      %737 = vmatpush1.msra.mxu0 %v504
      %738 = vmatprep.subr.mxu0 %v501
      %739 = vmatpush1.msra.mxu0 %v500
      %740 = vmatprep.subr.mxu0 0.0
      %741 = vmatpush2.msra.mxu0 0.0
      %742 = vmatprep.subr.mxu0 0.0
      %743 = vmatpush2.msra.mxu0 0.0
      %744 = vmatprep.subr.mxu0 0.0
      %745 = vmatpush2.msra.mxu0 0.0
      %746 = vmatprep.subr.mxu0 0.0
      %747 = vmatpush2.msra.mxu0 0.0
      %748 = vmatprep.subr.mxu0 0.0
      %749 = vmatpush2.msra.mxu0 0.0
      %750 = vmatprep.subr.mxu0 0.0
      %751 = vmatpush2.msra.mxu0 0.0
      %752 = vmatprep.subr.mxu0 0.0
      %753 = vmatpush2.msra.mxu0 0.0
      %754 = vmatprep.subr.mxu0 0.0
      %755 = vmatpush2.msra.mxu0 0.0
      %756 = vmatprep.subr.mxu0 0.0
      %757 = vmatpush2.msra.mxu0 0.0
      %758 = vmatprep.subr.mxu0 0.0
      %759 = vmatpush2.msra.mxu0 0.0
      %760 = vmatprep.subr.mxu0 0.0
      %761 = vmatpush2.msra.mxu0 0.0
      %762 = vmatprep.subr.mxu0 0.0
      %763 = vmatpush2.msra.mxu0 0.0
      %764 = vmatprep.subr.mxu0 0.0
      %765 = vmatpush2.msra.mxu0 0.0
      %766 = vmatprep.subr.mxu0 0.0
      %767 = vmatpush2.msra.mxu0 0.0
      %768 = vmatprep.subr.mxu0 0.0
      %769 = vmatpush2.msra.mxu0 0.0
      %770 = vmatprep.subr.mxu0 0.0
      %771 = vmatpush2.msra.mxu0 0.0
      %772 = vmatprep.mubr.f32.mxu0 0.0
      %773 = vmatmul.mubr.f32.gmra.mxu0 %v572
      %v774 = vpop.f32.mrf.mxu0
      %v775 = vadd.f32 %v533, %v774
      %v776 = vpop.f32.mrf.mxu0
      %v777 = vadd.f32 %v533, %v776
      %778 = vmatprep.mubr.f32.mxu0 0.0
      %779 = vmatmul.mubr.f32.gmra.mxu0 %v575
      %v780 = vpop.f32.mrf.mxu0
      %v781 = vadd.f32 %v538, %v780
      %v782 = vpop.f32.mrf.mxu0
      %v783 = vadd.f32 %v538, %v782
      %784 = vmatprep.mubr.f32.mxu0 0.0
      %785 = vmatmul.mubr.f32.gmra.mxu0 %v578
      %v786 = vpop.f32.mrf.mxu0
      %v787 = vadd.f32 %v543, %v786
      %v788 = vpop.f32.mrf.mxu0
      %v789 = vadd.f32 %v543, %v788
      %790 = vmatprep.mubr.f32.mxu0 0.0
      %791 = vmatmul.mubr.f32.gmra.mxu0 %v581
      %v792 = vpop.f32.mrf.mxu0
      %v793 = vadd.f32 %v548, %v792
      %v794 = vpop.f32.mrf.mxu0
      %v795 = vadd.f32 %v548, %v794
      %796 = vmatprep.mubr.f32.mxu0 0.0
      %797 = vmatmul.mubr.f32.gmra.mxu0 %v584
      %v798 = vpop.f32.mrf.mxu0
      %v799 = vadd.f32 %v553, %v798
      %v800 = vpop.f32.mrf.mxu0
      %v801 = vadd.f32 %v553, %v800
      %802 = vmatprep.mubr.f32.mxu0 0.0
      %803 = vmatmul.mubr.f32.gmra.mxu0 %v587
      %v804 = vpop.f32.mrf.mxu0
      %v805 = vadd.f32 %v558, %v804
      %v806 = vpop.f32.mrf.mxu0
      %v807 = vadd.f32 %v558, %v806
      %808 = vmatprep.mubr.f32.mxu0 0.0
      %809 = vmatmul.mubr.f32.gmra.mxu0 %v590
      %v810 = vpop.f32.mrf.mxu0
      %v811 = vadd.f32 %v563, %v810
      %v812 = vpop.f32.mrf.mxu0
      %v813 = vadd.f32 %v563, %v812
      %814 = vmatprep.mubr.f32.mxu0 0.0
      %815 = vmatmul.mubr.f32.gmra.mxu0 %v593
      %v816 = vpop.f32.mrf.mxu0
      %v817 = vadd.f32 %v568, %v816
      %v818 = vpop.f32.mrf.mxu0
      %v819 = vadd.f32 %v568, %v818
      %820 = vdwg.mxu0
      %v821 = vmax.f32 %v662, 0.0
      %v822 = vmax.f32 %v664, 0.0
      %v823 = vmax.f32 %v775, 0.0
      %v824 = vmax.f32 %v777, 0.0
      %v825 = vmax.f32 %v668, 0.0
      %v826 = vmax.f32 %v670, 0.0
      %v827 = vmax.f32 %v781, 0.0
      %v828 = vmax.f32 %v783, 0.0
      %v829 = vmax.f32 %v674, 0.0
      %v830 = vmax.f32 %v676, 0.0
      %v831 = vmax.f32 %v787, 0.0
      %v832 = vmax.f32 %v789, 0.0
      %v833 = vmax.f32 %v680, 0.0
      %v834 = vmax.f32 %v682, 0.0
      %v835 = vmax.f32 %v793, 0.0
      %v836 = vmax.f32 %v795, 0.0
      %v837 = vmax.f32 %v686, 0.0
      %v838 = vmax.f32 %v688, 0.0
      %v839 = vmax.f32 %v799, 0.0
      %v840 = vmax.f32 %v801, 0.0
      %v841 = vmax.f32 %v692, 0.0
      %v842 = vmax.f32 %v694, 0.0
      %v843 = vmax.f32 %v805, 0.0
      %v844 = vmax.f32 %v807, 0.0
      %v845 = vmax.f32 %v698, 0.0
      %v846 = vmax.f32 %v700, 0.0
      %v847 = vmax.f32 %v811, 0.0
      %v848 = vmax.f32 %v813, 0.0
      %v849 = vmax.f32 %v704, 0.0
      %v850 = vmax.f32 %v706, 0.0
      %v851 = vmax.f32 %v817, 0.0
      %v852 = vmax.f32 %v819, 0.0
      %854 = vset.pattern.permute.xlu0 0
      %855 = vperm.xlu0 %854, %v315
      %v856 = vpop.permute.xlu0 %855
      %v859 = vsel %vm570, %v314, 0
      %861 = vmatprep.subr.mxu0 0.0
      %862 = vmatpush1.msra.mxu0 0.0
      %863 = vmatprep.subr.mxu0 0.0
      %864 = vmatpush1.msra.mxu0 0.0
      %865 = vmatprep.subr.mxu0 0.0
      %866 = vmatpush1.msra.mxu0 0.0
      %867 = vmatprep.subr.mxu0 0.0
      %868 = vmatpush1.msra.mxu0 0.0
      %869 = vmatprep.subr.mxu0 0.0
      %870 = vmatpush1.msra.mxu0 0.0
      %871 = vmatprep.subr.mxu0 0.0
      %872 = vmatpush1.msra.mxu0 0.0
      %873 = vmatprep.subr.mxu0 0.0
      %874 = vmatpush1.msra.mxu0 0.0
      %875 = vmatprep.subr.mxu0 0.0
      %876 = vmatpush1.msra.mxu0 0.0
      %877 = vmatprep.subr.mxu0 %v850
      %878 = vmatpush1.msra.mxu0 %v849
      %879 = vmatprep.subr.mxu0 %v846
      %880 = vmatpush1.msra.mxu0 %v845
      %881 = vmatprep.subr.mxu0 %v842
      %882 = vmatpush1.msra.mxu0 %v841
      %883 = vmatprep.subr.mxu0 %v838
      %884 = vmatpush1.msra.mxu0 %v837
      %885 = vmatprep.subr.mxu0 %v834
      %886 = vmatpush1.msra.mxu0 %v833
      %887 = vmatprep.subr.mxu0 %v830
      %888 = vmatpush1.msra.mxu0 %v829
      %889 = vmatprep.subr.mxu0 %v826
      %890 = vmatpush1.msra.mxu0 %v825
      %891 = vmatprep.subr.mxu0 %v822
      %892 = vmatpush1.msra.mxu0 %v821
      %893 = vmatprep.subr.mxu0 0.0
      %894 = vmatpush2.msra.mxu0 0.0
      %895 = vmatprep.subr.mxu0 0.0
      %896 = vmatpush2.msra.mxu0 0.0
      %897 = vmatprep.subr.mxu0 0.0
      %898 = vmatpush2.msra.mxu0 0.0
      %899 = vmatprep.subr.mxu0 0.0
      %900 = vmatpush2.msra.mxu0 0.0
      %901 = vmatprep.subr.mxu0 0.0
      %902 = vmatpush2.msra.mxu0 0.0
      %903 = vmatprep.subr.mxu0 0.0
      %904 = vmatpush2.msra.mxu0 0.0
      %905 = vmatprep.subr.mxu0 0.0
      %906 = vmatpush2.msra.mxu0 0.0
      %907 = vmatprep.subr.mxu0 0.0
      %908 = vmatpush2.msra.mxu0 0.0
      %909 = vmatprep.subr.mxu0 0.0
      %910 = vmatpush2.msra.mxu0 0.0
      %911 = vmatprep.subr.mxu0 0.0
      %912 = vmatpush2.msra.mxu0 0.0
      %913 = vmatprep.subr.mxu0 0.0
      %914 = vmatpush2.msra.mxu0 0.0
      %915 = vmatprep.subr.mxu0 0.0
      %916 = vmatpush2.msra.mxu0 0.0
      %917 = vmatprep.subr.mxu0 0.0
      %918 = vmatpush2.msra.mxu0 0.0
      %919 = vmatprep.subr.mxu0 0.0
      %920 = vmatpush2.msra.mxu0 0.0
      %921 = vmatprep.subr.mxu0 0.0
      %922 = vmatpush2.msra.mxu0 0.0
      %923 = vmatprep.subr.mxu0 0.0
      %924 = vmatpush2.msra.mxu0 0.0
      %925 = vmatprep.mubr.f32.mxu0 0.0
      %926 = vmatmul.mubr.f32.gmra.mxu0 %v859
      %v927 = vpop.f32.mrf.mxu0
      %v928 = vadd.f32 %v856, %v927
      %v929 = vpop.f32.mrf.mxu0
      %v930 = vadd.f32 %v856, %v929
      %931 = vdwg.mxu0
      %932 = vmatprep.subr.mxu0 0.0
      %933 = vmatpush1.msra.mxu0 0.0
      %934 = vmatprep.subr.mxu0 0.0
      %935 = vmatpush1.msra.mxu0 0.0
      %936 = vmatprep.subr.mxu0 0.0
      %937 = vmatpush1.msra.mxu0 0.0
      %938 = vmatprep.subr.mxu0 0.0
      %939 = vmatpush1.msra.mxu0 0.0
      %940 = vmatprep.subr.mxu0 0.0
      %941 = vmatpush1.msra.mxu0 0.0
      %942 = vmatprep.subr.mxu0 0.0
      %943 = vmatpush1.msra.mxu0 0.0
      %944 = vmatprep.subr.mxu0 0.0
      %945 = vmatpush1.msra.mxu0 0.0
      %946 = vmatprep.subr.mxu0 0.0
      %947 = vmatpush1.msra.mxu0 0.0
      %948 = vmatprep.subr.mxu0 %v852
      %949 = vmatpush1.msra.mxu0 %v851
      %950 = vmatprep.subr.mxu0 %v848
      %951 = vmatpush1.msra.mxu0 %v847
      %952 = vmatprep.subr.mxu0 %v844
      %953 = vmatpush1.msra.mxu0 %v843
      %954 = vmatprep.subr.mxu0 %v840
      %955 = vmatpush1.msra.mxu0 %v839
      %956 = vmatprep.subr.mxu0 %v836
      %957 = vmatpush1.msra.mxu0 %v835
      %958 = vmatprep.subr.mxu0 %v832
      %959 = vmatpush1.msra.mxu0 %v831
      %960 = vmatprep.subr.mxu0 %v828
      %961 = vmatpush1.msra.mxu0 %v827
      %962 = vmatprep.subr.mxu0 %v824
      %963 = vmatpush1.msra.mxu0 %v823
      %964 = vmatprep.subr.mxu0 0.0
      %965 = vmatpush2.msra.mxu0 0.0
      %966 = vmatprep.subr.mxu0 0.0
      %967 = vmatpush2.msra.mxu0 0.0
      %968 = vmatprep.subr.mxu0 0.0
      %969 = vmatpush2.msra.mxu0 0.0
      %970 = vmatprep.subr.mxu0 0.0
      %971 = vmatpush2.msra.mxu0 0.0
      %972 = vmatprep.subr.mxu0 0.0
      %973 = vmatpush2.msra.mxu0 0.0
      %974 = vmatprep.subr.mxu0 0.0
      %975 = vmatpush2.msra.mxu0 0.0
      %976 = vmatprep.subr.mxu0 0.0
      %977 = vmatpush2.msra.mxu0 0.0
      %978 = vmatprep.subr.mxu0 0.0
      %979 = vmatpush2.msra.mxu0 0.0
      %980 = vmatprep.subr.mxu0 0.0
      %981 = vmatpush2.msra.mxu0 0.0
      %982 = vmatprep.subr.mxu0 0.0
      %983 = vmatpush2.msra.mxu0 0.0
      %984 = vmatprep.subr.mxu0 0.0
      %985 = vmatpush2.msra.mxu0 0.0
      %986 = vmatprep.subr.mxu0 0.0
      %987 = vmatpush2.msra.mxu0 0.0
      %988 = vmatprep.subr.mxu0 0.0
      %989 = vmatpush2.msra.mxu0 0.0
      %990 = vmatprep.subr.mxu0 0.0
      %991 = vmatpush2.msra.mxu0 0.0
      %992 = vmatprep.subr.mxu0 0.0
      %993 = vmatpush2.msra.mxu0 0.0
      %994 = vmatprep.subr.mxu0 0.0
      %995 = vmatpush2.msra.mxu0 0.0
      %996 = vmatprep.mubr.f32.mxu0 0.0
      %997 = vmatmul.mubr.f32.gmra.mxu0 %v859
      %v998 = vpop.f32.mrf.mxu0
      %v999 = vadd.f32 %v856, %v998
      %v1000 = vpop.f32.mrf.mxu0
      %v1001 = vadd.f32 %v856, %v1000
      %1002 = vdwg.mxu0
      %vm1003 = vcmp.eq.f32.partialorder %v316, 0.0
      %v1004 = vsel %vm1003, 1, 0
      %v1005 = vlaneseq
      %v1006 = vshrl.u32 %v1005, 7
      %v1007 = vsub.s32 1, %v1006
      %v1008 = vrot.slane %v1004, %v1007
      %v1009 = vlaneseq
      %v1010 = vshrl.u32 %v1009, 7
      %v1011 = vsub.s32 3, %v1010
      %v1012 = vrot.slane %v1004, %v1011
      %v1013 = vlaneseq
      %v1014 = vshrl.u32 %v1013, 7
      %v1015 = vsub.s32 5, %v1014
      %v1016 = vrot.slane %v1004, %v1015
      %v1017 = vlaneseq
      %v1018 = vshrl.u32 %v1017, 7
      %v1019 = vsub.s32 7, %v1018
      %v1020 = vrot.slane %v1004, %v1019
      %v1021 = vlaneseq
      %v1022 = vshrl.u32 %v1021, 7
      %v1023 = vsub.s32 1, %v1022
      %v1024 = vrot.slane %v1008, %v1023
      %v1025 = vlaneseq
      %v1026 = vshrl.u32 %v1025, 7
      %v1027 = vsub.s32 1, %v1026
      %v1028 = vrot.slane %v1012, %v1027
      %v1029 = vlaneseq
      %v1030 = vshrl.u32 %v1029, 7
      %v1031 = vsub.s32 1, %v1030
      %v1032 = vrot.slane %v1016, %v1031
      %v1033 = vlaneseq
      %v1034 = vshrl.u32 %v1033, 7
      %v1035 = vsub.s32 1, %v1034
      %v1036 = vrot.slane %v1020, %v1035
      %vm1037 = vcmp.eq.s32.totalorder %v1024, 1
      %vm1038 = vcmp.eq.s32.totalorder %v1028, 1
      %vm1039 = vcmp.eq.s32.totalorder %v1032, 1
      %vm1040 = vcmp.eq.s32.totalorder %v1036, 1
      %v1045 = vrot.slane %v928, 2
      %v1046 = vrot.slane %v930, 2
      %v1047 = vrot.slane %v999, 2
      %v1048 = vrot.slane %v1001, 2
      %v1053 = vsel %vm1037, %v928, %v1045
      %v1054 = vsel %vm1038, %v930, %v1046
      %v1055 = vsel %vm1039, %v999, %v1047
      %v1056 = vsel %vm1040, %v1001, %v1048
      %vm1057 = vcmp.eq.f32.partialorder %v316, 1.0
      %vm1058 = vmor %vm1003, %vm1057
      %v1059 = vxor.u32 %v1053, 2147483648
      %v1060 = vxor.u32 %v1054, 2147483648
      %v1061 = vxor.u32 %v1055, 2147483648
      %v1062 = vxor.u32 %v1056, 2147483648
      %v1063 = vmul.f32 %v1059, 1.442695
      %v1064 = vpow.pop %v1063
      %v1065 = vmul.f32 %v1060, 1.442695
      %v1066 = vpow.pop %v1065
      %v1067 = vmul.f32 %v1061, 1.442695
      %v1068 = vpow.pop %v1067
      %v1069 = vmul.f32 %v1062, 1.442695
      %v1070 = vpow.pop %v1069
      %v1071 = vadd.f32 %v1064, 1.0
      %v1072 = vadd.f32 %v1066, 1.0
      %v1073 = vadd.f32 %v1068, 1.0
      %v1074 = vadd.f32 %v1070, 1.0
      %v1075 = vrcp.pop %v1071
      %v1076 = vmul.f32 1.0, %v1075
      %v1077 = vrcp.pop %v1072
      %v1078 = vmul.f32 1.0, %v1077
      %v1079 = vrcp.pop %v1073
      %v1080 = vmul.f32 1.0, %v1079
      %v1081 = vrcp.pop %v1074
      %v1082 = vmul.f32 1.0, %v1081
      %v1083 = vsel %vm1058, 1, 0
      %v1084 = vlaneseq
      %v1085 = vshrl.u32 %v1084, 7
      %v1086 = vsub.s32 1, %v1085
      %v1087 = vrot.slane %v1083, %v1086
      %v1088 = vlaneseq
      %v1089 = vshrl.u32 %v1088, 7
      %v1090 = vsub.s32 3, %v1089
      %v1091 = vrot.slane %v1083, %v1090
      %v1092 = vlaneseq
      %v1093 = vshrl.u32 %v1092, 7
      %v1094 = vsub.s32 5, %v1093
      %v1095 = vrot.slane %v1083, %v1094
      %v1096 = vlaneseq
      %v1097 = vshrl.u32 %v1096, 7
      %v1098 = vsub.s32 7, %v1097
      %v1099 = vrot.slane %v1083, %v1098
      %v1100 = vlaneseq
      %v1101 = vshrl.u32 %v1100, 7
      %v1102 = vsub.s32 1, %v1101
      %v1103 = vrot.slane %v1087, %v1102
      %v1104 = vlaneseq
      %v1105 = vshrl.u32 %v1104, 7
      %v1106 = vsub.s32 1, %v1105
      %v1107 = vrot.slane %v1091, %v1106
      %v1108 = vlaneseq
      %v1109 = vshrl.u32 %v1108, 7
      %v1110 = vsub.s32 1, %v1109
      %v1111 = vrot.slane %v1095, %v1110
      %v1112 = vlaneseq
      %v1113 = vshrl.u32 %v1112, 7
      %v1114 = vsub.s32 1, %v1113
      %v1115 = vrot.slane %v1099, %v1114
      %vm1116 = vcmp.eq.s32.totalorder %v1103, 1
      %vm1117 = vcmp.eq.s32.totalorder %v1107, 1
      %vm1118 = vcmp.eq.s32.totalorder %v1111, 1
      %vm1119 = vcmp.eq.s32.totalorder %v1115, 1
      %v1120 = vsel %vm1116, %v1076, 0.0
      %v1121 = vsel %vm1117, %v1078, 0.0
      %v1122 = vsel %vm1118, %v1080, 0.0
      %v1123 = vsel %vm1119, %v1082, 0.0
      %v1128 = vcombine.low %v1120, %v1121
      %v1129 = vcombine.low %v1122, %v1123
      %v1131 = vunpack.c.l.s4 1983009808
      %v1132 = vunpack.c.0.s8 %v1131
      %v1133 = vlaneseq
      %v1134 = vshrl.u32 %v1133, 7
      %v1135 = vsub.s32 %v1132, %v1134
      %v1136 = vrot.slane %v1128, %v1135
      %v1138 = vunpack.c.l.s4 1983009808
      %v1139 = vunpack.c.0.s8 %v1138
      %v1140 = vlaneseq
      %v1141 = vshrl.u32 %v1140, 7
      %v1142 = vsub.s32 %v1139, %v1141
      %v1143 = vrot.slane %v1129, %v1142
      %v1144 = vcombine.low %v1136, %v1143
      %1146 = vst [vmem:[%s280] sm:$0xff] %v1144
      %s1147 = smul.u32 4, %s18
      %p1148 = scmp.lt.s32.totalorder %s1147, 7
      %s1149 = scalar_select %p1148, %s1147, 7
      %s1150 = smul.addr %s1149, 2
      %s1151 = scalar_lea.vmem %s7, %s1150
      // Predicated region
      $region49: #{thermostat_single_nn_fused.1} parent=47 // pred_check
        %p1152 = pneg %p188
      $region50: #{thermostat_single_nn_fused.1} parent=47 // pred_check_branch
        %1154 = sbr.rel (%p1152) target = $region52
      $region51: #{thermostat_single_nn_fused.1} parent=47 // pred_region
        %s1155 = smul.u32 4, %s18
      $region52: #{thermostat_single_nn_fused.1} parent=47 // pred_fallthru
        _
    $region48: #{thermostat_single_nn_fused.1} parent=5 // pred_fallthru
      _
    %p1156 = scmp.le.s32.totalorder 2, %s13
    // Predicated region
    $region53: #{thermostat_single_nn_fused.1} parent=5 // pred_check
      %p1157 = pneg %p1156
    $region54: #{thermostat_single_nn_fused.1} parent=5 // pred_check_branch
      %1159 = sbr.rel (%p1157) target = $region56
    $region55: #{thermostat_single_nn_fused.1} parent=5 // pred_region
      %s1160 = ssub.s32 %s13, 2
      // Predicated region
      $region57: #{thermostat_single_nn_fused.1} parent=55 // pred_check
        %p1161 = pneg %p194
      $region58: #{thermostat_single_nn_fused.1} parent=55 // pred_check_branch
        %1163 = sbr.rel (%p1161) target = $region60
      $region59: #{thermostat_single_nn_fused.1} parent=55 // pred_region
        %s1164 = smul.u32 4, %s19
        %p1165 = scmp.lt.s32.totalorder %s1164, 7
        %s1166 = scalar_select %p1165, %s1164, 7
        %s1167 = smul.addr %s1166, 2
        %s1168 = scalar_lea.vmem %s7, %s1167
      $region60: #{thermostat_single_nn_fused.1} parent=55 // pred_fallthru
        _
    $region56: #{thermostat_single_nn_fused.1} parent=5 // pred_fallthru
      _
  $region6: #{thermostat_single_nn_fused.1} parent=0 // loop_footer
    %s17 = sadd.s32 1, %s13
  $region7: #{thermostat_single_nn_fused.1} parent=0 // loop_footer_branch
    %12 = sbr.rel target = $region3
  $region8: #{thermostat_single_nn_fused.1} parent=0 // loop_exit
    _

</llo_original>
